<compile_context>
chip_gen: v7x
topology: tpu7x:2x2x1
jax: 0.10.0
libtpu: 0.0.40
codegen_flags: <defaults>
</compile_context>

<pallas_src>
import math
import functools

import jax
import jax.numpy as jnp
from jax.experimental import pallas as pl
from jax.experimental.pallas import tpu as pltpu


def _round_up(x: int, m: int) -> int:
    return ((x + m - 1) // m) * m


def _vmem_capacity_bytes() -> int:
    """Physical VMEM per TensorCore; conservative fallback if the query fails."""
    try:
        info = pltpu.get_tpu_info()
        cap = int(getattr(info, "vmem_capacity_bytes", 0))
        if cap > 0:
            return cap
    except Exception:
        pass
    return 64 * 1024 * 1024  # v7x per-TC VMEM; safe lower bound for v5e/v6e too


# -----------------------------------------------------------------------------
# Kernels
# -----------------------------------------------------------------------------
def _linear_kernel_inplace(x_ref, w_ref, o_ref):
    """f32 output: accumulate directly into the k-invariant output block."""
    @pl.when(pl.program_id(2) == 0)
    def _():
        o_ref[...] = jnp.zeros_like(o_ref)

    # (tm, tk) @ (tk, tn) -> (tm, tn); weight is already in (K, N) layout so no
    # per-step transpose is needed inside the kernel.
    o_ref[...] += jnp.dot(x_ref[...], w_ref[...],
                          preferred_element_type=jnp.float32)


def _linear_kernel_scratch(x_ref, w_ref, o_ref, acc_ref):
    """Narrow output dtype: f32 VMEM accumulator, cast on the last K step."""
    @pl.when(pl.program_id(2) == 0)
    def _():
        acc_ref[...] = jnp.zeros_like(acc_ref)

    acc_ref[...] += jnp.dot(x_ref[...], w_ref[...],
                            preferred_element_type=jnp.float32)

    @pl.when(pl.program_id(2) == pl.num_programs(2) - 1)
    def _():
        o_ref[...] = acc_ref[...].astype(o_ref.dtype)


# -----------------------------------------------------------------------------
# Wrapper
# -----------------------------------------------------------------------------
@functools.partial(jax.jit, static_argnames=("tm", "tn", "tk", "use_bf16"))
def linear_pallas(x, weight, *, tm=None, tn=None, tk=None, use_bf16=False):
    """y = x @ weight.T, with weight in nn.Linear layout (out_features, in_features)."""
    *lead, K = x.shape
    N, K_w = weight.shape
    if K != K_w:
        raise ValueError("in_features mismatch between x and weight")
    M = math.prod(lead) if lead else 1

    out_dtype = x.dtype
    compute_dtype = jnp.bfloat16 if use_bf16 else x.dtype
    in_bytes = jnp.dtype(compute_dtype).itemsize
    out_bytes = jnp.dtype(out_dtype).itemsize
    use_scratch = out_dtype != jnp.float32
    sub_align = 16 if in_bytes == 2 else 8   # sublane packing: bf16 packs 16 rows/vreg

    # --- tile selection -------------------------------------------------------
    tm = 1024 if tm is None else tm
    tn = 1024 if tn is None else tn
    tk = 1024 if tk is None else tk
    tm = _round_up(min(tm, _round_up(M, sub_align)), sub_align)
    tn = _round_up(min(tn, _round_up(N, 128)), 128)
    tk = _round_up(min(tk, _round_up(K, 128)), 128)

    capacity = _vmem_capacity_bytes()
    budget = int(0.70 * capacity)            # leave headroom for double-buffering slack

    def _vmem_est(tm_, tn_, tk_):
        b = 2 * (tm_ * tk_ + tk_ * tn_) * in_bytes + 2 * tm_ * tn_ * out_bytes
        if use_scratch:
            b += tm_ * tn_ * 4
        return b

    while _vmem_est(tm, tn, tk) > budget:
        if tk >= tn and tk >= tm and tk > 128:
            tk = max(128, (tk // 2) // 128 * 128)
        elif tn >= tm and tn > 128:
            tn = max(128, (tn // 2) // 128 * 128)
        elif tm > sub_align:
            tm = max(sub_align, _round_up(tm // 2, sub_align))
        else:
            break

    # Keep the parallel grid extent (M/tm)*(N/tn) >= 2 so dual-TensorCore chips
    # (v7x) can shard it across cores; perf-neutral on single-TC v5e/v6e.
    while pl.cdiv(M, tm) * pl.cdiv(N, tn) < 2:
        if tn > 128 and _round_up(N, 128) // 128 >= 2:
            tn = max(128, (tn // 2) // 128 * 128)
        elif tm > sub_align and _round_up(M, sub_align) // sub_align >= 2:
            tm = max(sub_align, _round_up(tm // 2, sub_align))
        else:
            break

    Mp, Np, Kp = _round_up(M, tm), _round_up(N, tn), _round_up(K, tk)

    # --- operands: flatten, one-time weight transpose to (K, N), zero-pad ------
    x2 = x.reshape(M, K).astype(compute_dtype)
    w_t = weight.T.astype(compute_dtype)             # amortized across all M/tm tiles
    if (Mp, Kp) != (M, K):
        x2 = jnp.pad(x2, ((0, Mp - M), (0, Kp - K)))
    if (Kp, Np) != (K, N):
        w_t = jnp.pad(w_t, ((0, Kp - K), (0, Np - N)))

    grid = (Mp // tm, Np // tn, Kp // tk)

    kernel = _linear_kernel_scratch if use_scratch else _linear_kernel_inplace
    scratch = [pltpu.VMEM((tm, tn), jnp.float32)] if use_scratch else []

    cost = pl.CostEstimate(
        flops=2 * M * N * K,
        transcendentals=0,
        bytes_accessed=in_bytes * (M * K + N * K) + out_bytes * M * N,
    )

    out = pl.pallas_call(
        kernel,
        out_shape=jax.ShapeDtypeStruct((Mp, Np), out_dtype),
        grid_spec=pltpu.PrefetchScalarGridSpec(
            num_scalar_prefetch=0,
            grid=grid,
            in_specs=[
                pl.BlockSpec((tm, tk), lambda i, j, k: (i, k)),   # x tile
                pl.BlockSpec((tk, tn), lambda i, j, k: (k, j)),   # weight (K, N) tile
            ],
            out_specs=pl.BlockSpec((tm, tn), lambda i, j, k: (i, j)),
            scratch_shapes=scratch,
        ),
        compiler_params=pltpu.CompilerParams(
            dimension_semantics=("parallel", "parallel", "arbitrary"),
            vmem_limit_bytes=int(min(0.85 * capacity, 100 * 1024 * 1024)),
        ),
        cost_estimate=cost,
    )(x2, w_t)

    out = out[:M, :N]
    return out.reshape(*lead, N)


def _trunc_normal(key, shape, in_f, out_f):
    std = (2.0 / (in_f + out_f)) ** 0.5
    return std * jax.random.truncated_normal(key, -3.0, 3.0, shape, jnp.float32)


if __name__ == "__main__":
    root = jax.random.PRNGKey(0)
    k_x1, k_w1, k_x2, k_w2, k_x3, k_w3 = jax.random.split(root, 6)

    # --- small config consistent with the module: batch=2, seq=8, hidden=32 -> 64 ---
    B, S, D_IN, D_OUT = 2, 8, 32, 64
    x_small = jax.random.normal(k_x1, (B, S, D_IN), jnp.float32)
    w_small = _trunc_normal(k_w1, (D_OUT, D_IN), D_IN, D_OUT)   # (out, in) like nn.Linear

    y_small = jax.block_until_ready(linear_pallas(x_small, w_small))
    y_small_ref = x_small @ w_small.T
    assert y_small.shape == (B, S, D_OUT)
    assert bool(jnp.allclose(y_small, y_small_ref, rtol=1e-4, atol=1e-4)), \
        "small-config mismatch vs reference"

    # --- lane-dense config exercising the multi-tile (M, N, K) path ---
    B2, S2, K2, N2 = 4, 64, 512, 384     # M = 256
    x_big = jax.random.normal(k_x2, (B2, S2, K2), jnp.float32)
    w_big = _trunc_normal(k_w2, (N2, K2), K2, N2)

    y_big = jax.block_until_ready(linear_pallas(x_big, w_big))
    y_big_ref = x_big @ w_big.T
    assert y_big.shape == (B2, S2, N2)
    assert bool(jnp.allclose(y_big, y_big_ref, rtol=1e-4, atol=1e-4)), \
        "tiled-config mismatch vs reference"

    # --- awkward (non-tile-divisible) shapes exercising the padding path ---
    x_rag = jax.random.normal(k_x3, (3, 5, 40), jnp.float32)     # M = 15, K = 40
    w_rag = _trunc_normal(k_w3, (72, 40), 40, 72)                # N = 72
    y_rag = jax.block_until_ready(linear_pallas(x_rag, w_rag))
    y_rag_ref = x_rag @ w_rag.T
    assert y_rag.shape == (3, 5, 72)
    assert bool(jnp.allclose(y_rag, y_rag_ref, rtol=1e-4, atol=1e-4)), \
        "padded-config mismatch vs reference"

    print("KERNEL_OK")
</pallas_src>

<mosaic_0001>
module attributes {stable_mosaic.version = 11 : i64} {
  func.func @_linear_kernel_inplace(%arg0: i32, %arg1: i32, %arg2: i32, %arg3: memref<8x128xf32, #tpu.memory_space<vmem>>, %arg4: memref<128x128xf32, #tpu.memory_space<vmem>>, %arg5: memref<8x128xf32, #tpu.memory_space<vmem>>) attributes {dimension_semantics = [#tpu.dimension_semantics<parallel>, #tpu.dimension_semantics<parallel>, #tpu.dimension_semantics<arbitrary>], iteration_bounds = array<i64: 2, 1, 1>, scalar_prefetch = 0 : i64, scratch_operands = 0 : i64, tpu.core_type = #tpu.core_type<tc>, window_params = [{transform_indices = @transform_0, window_bounds = array<i64: 8, 128>}, {transform_indices = @transform_1, window_bounds = array<i64: 128, 128>}, {transform_indices = @transform_2, window_bounds = array<i64: 8, 128>}]} {
    %c0_i32 = arith.constant 0 : i32
    %0 = arith.cmpi eq, %arg2, %c0_i32 : i32
    %1 = arith.extui %0 : i1 to i32
    %c0_i32_0 = arith.constant 0 : i32
    %2 = arith.cmpi ne, %1, %c0_i32_0 : i32
    scf.if %2 {
      %cst_8 = arith.constant 0.000000e+00 : f32
      %9 = vector.broadcast %cst_8 : f32 to vector<8x128xf32>
      %c0_9 = arith.constant 0 : index
      %c0_10 = arith.constant 0 : index
      %10 = vector.load %arg5[%c0_9, %c0_10] : memref<8x128xf32, #tpu.memory_space<vmem>>, vector<8x128xf32>
      tpu.vector_store %arg5[%c0_9, %c0_10], %9 {strides = array<i32>} : memref<8x128xf32, #tpu.memory_space<vmem>>, vector<8x128xf32>,
    } else {
    }
    %c0 = arith.constant 0 : index
    %c0_1 = arith.constant 0 : index
    %3 = vector.load %arg5[%c0, %c0_1] : memref<8x128xf32, #tpu.memory_space<vmem>>, vector<8x128xf32>
    %c0_2 = arith.constant 0 : index
    %c0_3 = arith.constant 0 : index
    %4 = vector.load %arg3[%c0_2, %c0_3] : memref<8x128xf32, #tpu.memory_space<vmem>>, vector<8x128xf32>
    %c0_4 = arith.constant 0 : index
    %c0_5 = arith.constant 0 : index
    %5 = vector.load %arg4[%c0_4, %c0_5] : memref<128x128xf32, #tpu.memory_space<vmem>>, vector<128x128xf32>
    %cst = arith.constant dense<0.000000e+00> : vector<8x128xf32>
    %6 = tpu.matmul %4, %5, %cst {dimension_numbers = #tpu.dot_dimension_numbers<[1], [0], [0], [1], [0, 0, 1, 1], [], []>} : vector<8x128xf32>, vector<128x128xf32>, vector<8x128xf32> -> vector<8x128xf32>
    %7 = arith.addf %3, %6 : vector<8x128xf32>
    %c0_6 = arith.constant 0 : index
    %c0_7 = arith.constant 0 : index
    %8 = vector.load %arg5[%c0_6, %c0_7] : memref<8x128xf32, #tpu.memory_space<vmem>>, vector<8x128xf32>
    tpu.vector_store %arg5[%c0_6, %c0_7], %7 {strides = array<i32>} : memref<8x128xf32, #tpu.memory_space<vmem>>, vector<8x128xf32>,
    return
  }
  func.func @transform_0(%arg0: i32, %arg1: i32, %arg2: i32) -> (i32, i32) {
    %c0_i32 = arith.constant 0 : i32
    return %arg0, %arg2 : i32, i32
  }
  func.func @transform_1(%arg0: i32, %arg1: i32, %arg2: i32) -> (i32, i32) {
    %c0_i32 = arith.constant 0 : i32
    return %arg2, %arg1 : i32, i32
  }
  func.func @transform_2(%arg0: i32, %arg1: i32, %arg2: i32) -> (i32, i32) {
    %c0_i32 = arith.constant 0 : i32
    return %arg0, %arg1 : i32, i32
  }
}

</mosaic_0001>

<llo_original>
// kernel: linear_pallas.1
$region0: #{linear_pallas.1}
  #allocation0 [shape = 'u32[]', space=smem, size = 0x4, offset = 0x4, fixed_abs, tag = 'smem constant byte address 0x4 - core index']
  #allocation1 [shape = 'u32[144,128]{1,0:T(1,128)}', space=vmem, size = 0x12000, scoped, tag = 'internal scratch']
  %s0 = inlined_call_operand.vmem [shape: f32[16,128], index: 0, kind: input, shape index: {}]
  %s1 = inlined_call_operand.vmem [shape: f32[128,128], index: 1, kind: input, shape index: {}]
  %s2 = inlined_call_operand.vmem [shape: f32[16,128], index: 2, kind: output, shape index: {}]
  %s3 = sld [smem:[#allocation0]]
  $region45: #{linear_pallas.1} parent=0
    _
  %s5 = ssub.s32 1, %s3
  %s6 = scalar_select 0, %s5, %s3
  loop: start=0, step=1, limit=4
  $region2: #{linear_pallas.1} parent=0 // loop_pre_header
    _
  $region3: #{linear_pallas.1} parent=0 // loop_header
    %s8 = sphi 0, %s12
    %p9 = scmp.ge.s32.totalorder %s8, 4
    %s15 = sphi 0, %s34
    %s16 = sphi 0, %s30
    %s17 = sphi 0, %s26
    %s18 = sphi 0, %s15
    %s19 = sphi 0, %s16
    %s20 = sphi 0, %s17
    %s21 = sphi 0, %s18
    %s22 = sphi 0, %s19
    %s23 = sphi 0, %s20
    %s39 = sphi 0, %s41
    %s42 = sphi 0, %s39
    %s43 = sphi 0, %s42
    %s59 = sphi 0, %s43
    %s67 = sphi 0, %s69
    %s70 = sphi 0, %s67
    %s71 = sphi 0, %s70
    %s87 = sphi 0, %s71
    %s95 = sphi 0, %s97
    %s98 = sphi 0, %s95
    %s99 = sphi 0, %s98
    %s115 = sphi 0, %s99
  $region4: #{linear_pallas.1} parent=0 // loop_header_branch
    %11 = sbr.rel (%p9) target = $region8
  $region5: #{linear_pallas.1} parent=0 // loop_body
    %s13 = ssub.s32 %s8, 1
    %s14 = ssub.s32 %s8, 2
    %s24 = sadd.s32 1, %s17
    %p25 = scmp.ge.s32.totalorder %s24, 1
    %s26 = scalar_select %p25, 0, %s24
    %s27 = sadd.s32 1, %s16
    %s28 = scalar_select %p25, %s27, %s16
    %p29 = scmp.ge.s32.totalorder %s28, 1
    %s30 = scalar_select %p29, 0, %s28
    %s31 = sadd.s32 1, %s15
    %s32 = scalar_select %p29, %s31, %s15
    %p33 = scmp.ge.s32.totalorder %s32, 2
    %s34 = scalar_select %p33, 0, %s32
    %s35 = ssub.s32 %s15, %s34
    %s36 = ssub.s32 %s17, %s26
    %s37 = sor.u32 %s35, %s36
    %p38 = scmp.eq.s32.totalorder %s37, 0
    %s40 = sadd.s32 %s39, 1
    %s41 = scalar_select %p38, %s39, %s40
    %p44 = pneg %p38
    %p45 = scmp.eq.s32.totalorder %s8, 1
    %p46 = por %p44, %p45
    %p47 = scmp.ne.s32.totalorder %s39, %s42
    %p48 = scmp.eq.s32.totalorder %s8, 0
    %p49 = por %p47, %p48
    %p50 = scmp.ne.s32.totalorder %s39, %s42
    %p51 = scmp.eq.s32.totalorder %s13, 1
    %p52 = por %p50, %p51
    %p53 = scmp.ne.s32.totalorder %s42, %s43
    %p54 = scmp.eq.s32.totalorder %s13, 0
    %p55 = por %p53, %p54
    %p56 = scmp.ne.s32.totalorder %s42, %s43
    %p57 = scmp.eq.s32.totalorder %s14, 1
    %p58 = por %p56, %p57
    %p60 = scmp.ne.s32.totalorder %s43, %s59
    %p61 = scmp.eq.s32.totalorder %s14, 0
    %p62 = por %p60, %p61
    %s63 = ssub.s32 %s17, %s26
    %s64 = ssub.s32 %s16, %s30
    %s65 = sor.u32 %s63, %s64
    %p66 = scmp.eq.s32.totalorder %s65, 0
    %s68 = sadd.s32 %s67, 1
    %s69 = scalar_select %p66, %s67, %s68
    %p72 = pneg %p66
    %p73 = scmp.eq.s32.totalorder %s8, 1
    %p74 = por %p72, %p73
    %p75 = scmp.ne.s32.totalorder %s67, %s70
    %p76 = scmp.eq.s32.totalorder %s8, 0
    %p77 = por %p75, %p76
    %p78 = scmp.ne.s32.totalorder %s67, %s70
    %p79 = scmp.eq.s32.totalorder %s13, 1
    %p80 = por %p78, %p79
    %p81 = scmp.ne.s32.totalorder %s70, %s71
    %p82 = scmp.eq.s32.totalorder %s13, 0
    %p83 = por %p81, %p82
    %p84 = scmp.ne.s32.totalorder %s70, %s71
    %p85 = scmp.eq.s32.totalorder %s14, 1
    %p86 = por %p84, %p85
    %p88 = scmp.ne.s32.totalorder %s71, %s87
    %p89 = scmp.eq.s32.totalorder %s14, 0
    %p90 = por %p88, %p89
    %s91 = ssub.s32 %s15, %s34
    %s92 = ssub.s32 %s16, %s30
    %s93 = sor.u32 %s91, %s92
    %p94 = scmp.eq.s32.totalorder %s93, 0
    %s96 = sadd.s32 %s95, 1
    %s97 = scalar_select %p94, %s95, %s96
    %p100 = pneg %p94
    %p101 = scmp.eq.s32.totalorder %s8, 1
    %p102 = por %p100, %p101
    %p103 = scmp.ne.s32.totalorder %s95, %s98
    %p104 = scmp.eq.s32.totalorder %s8, 0
    %p105 = por %p103, %p104
    %p106 = scmp.ne.s32.totalorder %s95, %s98
    %p107 = scmp.eq.s32.totalorder %s13, 1
    %p108 = por %p106, %p107
    %p109 = scmp.ne.s32.totalorder %s98, %s99
    %p110 = scmp.eq.s32.totalorder %s13, 0
    %p111 = por %p109, %p110
    %p112 = scmp.ne.s32.totalorder %s98, %s99
    %p113 = scmp.eq.s32.totalorder %s14, 1
    %p114 = por %p112, %p113
    %p116 = scmp.ne.s32.totalorder %s99, %s115
    %p117 = scmp.eq.s32.totalorder %s14, 0
    %p118 = por %p116, %p117
    %p119 = scmp.le.s32.totalorder 1, %s8
    %p120 = scmp.lt.s32.totalorder %s8, 3
    %p121 = pnand %p119, %p120
    %p122 = pneg %p121
    // Predicated region
    $region9: #{linear_pallas.1} parent=5 // pred_check
      _
    $region10: #{linear_pallas.1} parent=5 // pred_check_branch
      %124 = sbr.rel (%p121) target = $region12
    $region11: #{linear_pallas.1} parent=5 // pred_region
      %s125 = ssub.s32 %s8, 1
      // Predicated region
      $region13: #{linear_pallas.1} parent=11 // pred_check
        %p126 = pneg %p83
      $region14: #{linear_pallas.1} parent=11 // pred_check_branch
        %128 = sbr.rel (%p126) target = $region16
      $region15: #{linear_pallas.1} parent=11 // pred_region
        %s129 = smul.u32 16, %s20
        %p130 = scmp.lt.s32.totalorder %s129, 15
        %s131 = scalar_select %p130, %s129, 15
        %p132 = scmp.lt.s32.totalorder %s19, 0
        %s133 = scalar_select %p132, %s19, 0
        %s134 = sadd.s32 %s133, %s131
        %s135 = smul.addr %s134, 8
        %s136 = scalar_lea.vmem %s1, %s135
        %s137 = smul.u32 16, %s20
      $region16: #{linear_pallas.1} parent=11 // pred_fallthru
        _
    $region12: #{linear_pallas.1} parent=5 // pred_fallthru
      _
    %p138 = scmp.lt.s32.totalorder %s8, 2
    // Predicated region
    $region17: #{linear_pallas.1} parent=5 // pred_check
      %p139 = pneg %p138
    $region18: #{linear_pallas.1} parent=5 // pred_check_branch
      %141 = sbr.rel (%p139) target = $region20
    $region19: #{linear_pallas.1} parent=5 // pred_region
      // Predicated region
      $region21: #{linear_pallas.1} parent=19 // pred_check
        %p142 = pneg %p49
      $region22: #{linear_pallas.1} parent=19 // pred_check_branch
        %144 = sbr.rel (%p142) target = $region24
      $region23: #{linear_pallas.1} parent=19 // pred_region
        %p145 = scmp.lt.s32.totalorder %s15, 1
        %s146 = scalar_select %p145, %s15, 1
        %p147 = scmp.lt.s32.totalorder %s17, 0
        %s148 = scalar_select %p147, %s17, 0
        %s149 = sadd.s32 %s148, %s146
        %s150 = smul.addr %s149, 8
        %s151 = scalar_lea.vmem %s0, %s150
      $region24: #{linear_pallas.1} parent=19 // pred_fallthru
        _
    $region20: #{linear_pallas.1} parent=5 // pred_fallthru
      _
    %p152 = scmp.le.s32.totalorder 1, %s8
    %p153 = scmp.lt.s32.totalorder %s8, 3
    %p154 = pnand %p152, %p153
    %p155 = pneg %p154
    // Predicated region
    $region25: #{linear_pallas.1} parent=5 // pred_check
      _
    $region26: #{linear_pallas.1} parent=5 // pred_check_branch
      %157 = sbr.rel (%p154) target = $region28
    $region27: #{linear_pallas.1} parent=5 // pred_region
      %s158 = ssub.s32 %s8, 1
      %p159 = scmp.lt.s32.totalorder %s18, 1
      %s160 = scalar_select %p159, %s18, 1
      %p161 = scmp.lt.s32.totalorder %s20, 0
      %s162 = scalar_select %p161, %s20, 0
      %s163 = sadd.s32 %s162, %s160
      %s164 = smul.addr %s163, 8
      %s165 = scalar_lea.vmem %s0, %s164
      %p166 = pneg %p55
      %p167 = pneg %p52
      %s168 = smul.u32 16, %s20
      %p169 = scmp.lt.s32.totalorder %s168, 15
      %s170 = scalar_select %p169, %s168, 15
      %p171 = scmp.lt.s32.totalorder %s19, 0
      %s172 = scalar_select %p171, %s19, 0
      %s173 = sadd.s32 %s172, %s170
      %s174 = smul.addr %s173, 8
      %s175 = scalar_lea.vmem %s1, %s174
      %p176 = pneg %p83
      %p177 = pneg %p80
      %p178 = pneg %p111
      %p179 = pneg %p108
      %p180 = scmp.lt.s32.totalorder %s18, 1
      %s181 = scalar_select %p180, %s18, 1
      %p182 = scmp.lt.s32.totalorder %s19, 0
      %s183 = scalar_select %p182, %s19, 0
      %s184 = sadd.s32 %s183, %s181
      %s185 = smul.addr %s184, 8
      %s186 = scalar_lea.vmem %s2, %s185
      %p187 = scmp.lt.s32.totalorder %s18, 1
      %s188 = scalar_select %p187, %s18, 1
      %p189 = scmp.lt.s32.totalorder %s20, 0
      %s190 = scalar_select %p189, %s20, 0
      %s191 = sadd.s32 %s190, %s188
      %s192 = smul.addr %s191, 8
      %s193 = scalar_lea.vmem %s0, %s192
      %s194 = smul.u32 16, %s20
      %p195 = scmp.lt.s32.totalorder %s194, 15
      %s196 = scalar_select %p195, %s194, 15
      %p197 = scmp.lt.s32.totalorder %s19, 0
      %s198 = scalar_select %p197, %s19, 0
      %s199 = sadd.s32 %s198, %s196
      %s200 = smul.addr %s199, 8
      %s201 = scalar_lea.vmem %s1, %s200
      %s202 = smul.u32 16, %s20
      %p203 = scmp.lt.s32.totalorder %s18, 1
      %s204 = scalar_select %p203, %s18, 1
      %p205 = scmp.lt.s32.totalorder %s19, 0
      %s206 = scalar_select %p205, %s19, 0
      %s207 = sadd.s32 %s206, %s204
      %s208 = smul.addr %s207, 8
      %s209 = scalar_lea.vmem %s2, %s208
      %p210 = scmp.eq.s32.totalorder %s20, 0
      // Predicated region
      $region29: #{linear_pallas.1} parent=27 // pred_check
        %p211 = pneg %p210
      $region30: #{linear_pallas.1} parent=27 // pred_check_branch
        %213 = sbr.rel (%p211) target = $region32
      $region31: #{linear_pallas.1} parent=27 // pred_region
        %214 = vst [vmem:[%s209] sm:$0xff] 0.0
      $region32: #{linear_pallas.1} parent=27 // pred_fallthru
        _
      %v215 = vld [vmem:[%s209] sm:$0xff]
      %v216 = vld [vmem:[%s193] sm:$0xff]
      %v217 = vld [vmem:[%s201] sm:$0xff]
      %v218 = vld [vmem:[%s201 + $0x8] sm:$0xff]
      %v219 = vld [vmem:[%s201 + $0x10] sm:$0xff]
      %v220 = vld [vmem:[%s201 + $0x18] sm:$0xff]
      %v221 = vld [vmem:[%s201 + $0x20] sm:$0xff]
      %v222 = vld [vmem:[%s201 + $0x28] sm:$0xff]
      %v223 = vld [vmem:[%s201 + $0x30] sm:$0xff]
      %v224 = vld [vmem:[%s201 + $0x38] sm:$0xff]
      %v225 = vld [vmem:[%s201 + $0x40] sm:$0xff]
      %v226 = vld [vmem:[%s201 + $0x48] sm:$0xff]
      %v227 = vld [vmem:[%s201 + $0x50] sm:$0xff]
      %v228 = vld [vmem:[%s201 + $0x58] sm:$0xff]
      %v229 = vld [vmem:[%s201 + $0x60] sm:$0xff]
      %v230 = vld [vmem:[%s201 + $0x68] sm:$0xff]
      %v231 = vld [vmem:[%s201 + $0x70] sm:$0xff]
      %v232 = vld [vmem:[%s201 + $0x78] sm:$0xff]
      %233 = vmatprep.subr.mxu0 0.0
      %234 = vmatpush1.msra.mxu0 %v217
      %235 = vmatprep.subr.mxu0 0.0
      %236 = vmatpush1.msra.mxu0 %v218
      %237 = vmatprep.subr.mxu0 0.0
      %238 = vmatpush1.msra.mxu0 %v219
      %239 = vmatprep.subr.mxu0 0.0
      %240 = vmatpush1.msra.mxu0 %v220
      %241 = vmatprep.subr.mxu0 0.0
      %242 = vmatpush1.msra.mxu0 %v221
      %243 = vmatprep.subr.mxu0 0.0
      %244 = vmatpush1.msra.mxu0 %v222
      %245 = vmatprep.subr.mxu0 0.0
      %246 = vmatpush1.msra.mxu0 %v223
      %247 = vmatprep.subr.mxu0 0.0
      %248 = vmatpush1.msra.mxu0 %v224
      %249 = vmatprep.subr.mxu0 0.0
      %250 = vmatpush1.msra.mxu0 %v225
      %251 = vmatprep.subr.mxu0 0.0
      %252 = vmatpush1.msra.mxu0 %v226
      %253 = vmatprep.subr.mxu0 0.0
      %254 = vmatpush1.msra.mxu0 %v227
      %255 = vmatprep.subr.mxu0 0.0
      %256 = vmatpush1.msra.mxu0 %v228
      %257 = vmatprep.subr.mxu0 0.0
      %258 = vmatpush1.msra.mxu0 %v229
      %259 = vmatprep.subr.mxu0 0.0
      %260 = vmatpush1.msra.mxu0 %v230
      %261 = vmatprep.subr.mxu0 0.0
      %262 = vmatpush1.msra.mxu0 %v231
      %263 = vmatprep.subr.mxu0 0.0
      %264 = vmatpush1.msra.mxu0 %v232
      %265 = vmatprep.subr.mxu0 0.0
      %266 = vmatpush1.msra.mxu0 0.0
      %267 = vmatprep.subr.mxu0 0.0
      %268 = vmatpush1.msra.mxu0 0.0
      %269 = vmatprep.subr.mxu0 0.0
      %270 = vmatpush1.msra.mxu0 0.0
      %271 = vmatprep.subr.mxu0 0.0
      %272 = vmatpush1.msra.mxu0 0.0
      %273 = vmatprep.subr.mxu0 0.0
      %274 = vmatpush1.msra.mxu0 0.0
      %275 = vmatprep.subr.mxu0 0.0
      %276 = vmatpush1.msra.mxu0 0.0
      %277 = vmatprep.subr.mxu0 0.0
      %278 = vmatpush1.msra.mxu0 0.0
      %279 = vmatprep.subr.mxu0 0.0
      %280 = vmatpush1.msra.mxu0 0.0
      %281 = vmatprep.subr.mxu0 0.0
      %282 = vmatpush1.msra.mxu0 0.0
      %283 = vmatprep.subr.mxu0 0.0
      %284 = vmatpush1.msra.mxu0 0.0
      %285 = vmatprep.subr.mxu0 0.0
      %286 = vmatpush1.msra.mxu0 0.0
      %287 = vmatprep.subr.mxu0 0.0
      %288 = vmatpush1.msra.mxu0 0.0
      %289 = vmatprep.subr.mxu0 0.0
      %290 = vmatpush1.msra.mxu0 0.0
      %291 = vmatprep.subr.mxu0 0.0
      %292 = vmatpush1.msra.mxu0 0.0
      %293 = vmatprep.subr.mxu0 0.0
      %294 = vmatpush1.msra.mxu0 0.0
      %295 = vmatprep.subr.mxu0 0.0
      %296 = vmatpush1.msra.mxu0 0.0
      %297 = vmatprep.mubr.f32.mxu0 0.0
      %298 = vmatmul.mubr.f32.gmra.mrb[0].mxu0 %v216
      %v299 = vpop.f32.mrb[0].mxu0
      %v300 = vadd.f32 0.0, %v299
      %v301 = vpop.f32.mrb[0].mxu0
      %302 = vdwg.mxu0
      %v303 = vadd.f32 %v215, %v300
      %304 = vst [vmem:[%s209] sm:$0xff] %v303
      %p305 = scmp.lt.s32.totalorder %s18, 1
      %s306 = scalar_select %p305, %s18, 1
      %p307 = scmp.lt.s32.totalorder %s19, 0
      %s308 = scalar_select %p307, %s19, 0
      %s309 = sadd.s32 %s308, %s306
      %s310 = smul.addr %s309, 8
      %s311 = scalar_lea.vmem %s2, %s310
      // Predicated region
      $region33: #{linear_pallas.1} parent=27 // pred_check
        %p312 = pneg %p108
      $region34: #{linear_pallas.1} parent=27 // pred_check_branch
        %314 = sbr.rel (%p312) target = $region36
      $region35: #{linear_pallas.1} parent=27 // pred_region
        _
      $region36: #{linear_pallas.1} parent=27 // pred_fallthru
        _
    $region28: #{linear_pallas.1} parent=5 // pred_fallthru
      _
    %p315 = scmp.le.s32.totalorder 2, %s8
    // Predicated region
    $region37: #{linear_pallas.1} parent=5 // pred_check
      %p316 = pneg %p315
    $region38: #{linear_pallas.1} parent=5 // pred_check_branch
      %318 = sbr.rel (%p316) target = $region40
    $region39: #{linear_pallas.1} parent=5 // pred_region
      %s319 = ssub.s32 %s8, 2
      // Predicated region
      $region41: #{linear_pallas.1} parent=39 // pred_check
        %p320 = pneg %p114
      $region42: #{linear_pallas.1} parent=39 // pred_check_branch
        %322 = sbr.rel (%p320) target = $region44
      $region43: #{linear_pallas.1} parent=39 // pred_region
        %p323 = scmp.lt.s32.totalorder %s21, 1
        %s324 = scalar_select %p323, %s21, 1
        %p325 = scmp.lt.s32.totalorder %s22, 0
        %s326 = scalar_select %p325, %s22, 0
        %s327 = sadd.s32 %s326, %s324
        %s328 = smul.addr %s327, 8
        %s329 = scalar_lea.vmem %s2, %s328
      $region44: #{linear_pallas.1} parent=39 // pred_fallthru
        _
    $region40: #{linear_pallas.1} parent=5 // pred_fallthru
      _
  $region6: #{linear_pallas.1} parent=0 // loop_footer
    %s12 = sadd.s32 1, %s8
  $region7: #{linear_pallas.1} parent=0 // loop_footer_branch
    %7 = sbr.rel target = $region3
  $region8: #{linear_pallas.1} parent=0 // loop_exit
    _

</llo_original>
